<compile_context>
chip_gen: v7x
topology: tpu7x:2x2x1
jax: 0.10.0
libtpu: 0.0.40
codegen_flags: <defaults>
</compile_context>

<pallas_src>
import jax
import jax.numpy as jnp
import numpy as np
from jax.experimental import pallas as pl
from jax.experimental.pallas import tpu as pltpu

LATENT = 29              # latent_size
HIDDEN = (64, 64)        # dims
DIN = LATENT + 3         # MLP input width (32)
N = 128                  # number of SDF query samples


# --------------------------- packed-parameter slab ---------------------------
# Single (64, 128) f32 buffer; column layout (all slices are static):
#   cols   0: 32   W0   (64, 32)  lin0.weight                (out, in)
#   cols  32: 96   W1   (64, 64)  lin1.weight
#   col       96   b0   (64, 1)   lin0.bias  (column)
#   col       97   b1   (64, 1)   lin1.bias  (column)
#   col       98   W2^T (64, 1)   lin2.weight transposed     (column)
#   [0, 99]        b2             lin2.bias  (scalar)
#   cols 100:103   S0^T (29, 3)   scale_net[0].weight transposed
#   [0, 103:106]   s0b  (1, 3)    scale_net[0].bias (row)
#   cols 106:109   S1   (3, 3)    scale_net[2].weight
#   col      109   s1b  (3, 1)    scale_net[2].bias (column)
#   col      110   S2^T (3, 1)    scale_net[4].weight transposed (column)
#   [0, 111]       s2b            scale_net[4].bias (scalar)


# ----------------------------- Pallas kernel --------------------------------

def _decoder_kernel(xT_ref, p_ref, sdf_ref, scale_ref):
    xT = xT_ref[...]                                            # (DIN, N) lane-dense

    # ---- main SDF MLP, transposed layout: (features, samples) --------------
    w0 = p_ref[:, 0:32]                                         # (64, 32)
    b0 = p_ref[:, 96:97]                                        # (64, 1)
    h = jnp.dot(w0, xT, preferred_element_type=jnp.float32) + b0  # (64, N)
    h = jnp.maximum(h, 0.0)

    w1 = p_ref[:, 32:96]                                        # (64, 64)
    b1 = p_ref[:, 97:98]                                        # (64, 1)
    h = jnp.dot(w1, h, preferred_element_type=jnp.float32) + b1   # (64, N)
    h = jnp.maximum(h, 0.0)

    # final 64 -> 1 layer on VPU (mul) + XLU (sublane reduce); output lane-dense
    w2c = p_ref[:, 98:99]                                       # (64, 1) = W2^T
    b2 = p_ref[0:1, 99:100]                                     # (1, 1)
    y = jnp.sum(h * w2c, axis=0, keepdims=True) + b2            # (1, N)
    sdf_ref[...] = jnp.tanh(y)

    # ---- scale net on sample-0 latent (tiny matvecs -> VPU/XLU only) -------
    z = xT_ref[0:LATENT, 0:1]                                   # (29, 1) == input[0, :29]
    s0wT = p_ref[0:LATENT, 100:103]                             # (29, 3)
    s0b = p_ref[0:1, 103:106]                                   # (1, 3)
    h1 = jnp.sum(s0wT * z, axis=0, keepdims=True) + s0b         # (1, 3)
    h1 = jnp.maximum(h1, 0.0)

    s1w = p_ref[0:3, 106:109]                                   # (3, 3)
    s1b = p_ref[0:3, 109:110]                                   # (3, 1)
    h2 = jnp.sum(s1w * h1, axis=1, keepdims=True) + s1b         # (3, 1)
    h2 = jnp.maximum(h2, 0.0)

    s2wT = p_ref[0:3, 110:111]                                  # (3, 1)
    s2b = p_ref[0:1, 111:112]                                   # (1, 1)
    scale_ref[...] = jnp.sum(s2wT * h2, axis=0, keepdims=True) + s2b


# ------------------------------ Python wrapper -------------------------------

@jax.jit
def decoder_forward(inp, packed_params):
    """inp: (N, latent+3) f32; packed_params: (64, 128) f32 slab.

    Returns (sdf (N, 1), scale (1,)).
    """
    n, _ = inp.shape
    x_t = inp.T                                  # (DIN, N) lane-dense tile
    vmem = pl.BlockSpec(memory_space=pltpu.MemorySpace.VMEM)
    sdf_row, scale = pl.pallas_call(
        _decoder_kernel,
        out_shape=(jax.ShapeDtypeStruct((1, n), jnp.float32),
                   jax.ShapeDtypeStruct((1, 1), jnp.float32)),
        in_specs=[vmem, vmem],
        out_specs=(vmem, vmem),
    )(x_t, packed_params)
    # (1, N) -> (N, 1) is cheap and happens outside the kernel under jit.
    return sdf_row.reshape(n, 1), scale[0]


# --------------------------- parameter construction --------------------------

def _uniform(key, shape, bound):
    return jax.random.uniform(key, shape, jnp.float32, -bound, bound)


def make_params(key):
    """PyTorch nn.Linear-style init, in natural (PyTorch) orientations."""
    ks = jax.random.split(key, 12)
    b_in = 1.0 / np.sqrt(DIN)
    b_h0 = 1.0 / np.sqrt(HIDDEN[0])
    b_h1 = 1.0 / np.sqrt(HIDDEN[1])
    b_lat = 1.0 / np.sqrt(LATENT)
    b_3 = 1.0 / np.sqrt(3.0)
    return {
        "w0": _uniform(ks[0], (HIDDEN[0], DIN), b_in),       # lin0.weight
        "b0": _uniform(ks[1], (HIDDEN[0],), b_in),           # lin0.bias
        "w1": _uniform(ks[2], (HIDDEN[1], HIDDEN[0]), b_h0), # lin1.weight
        "b1": _uniform(ks[3], (HIDDEN[1],), b_h0),           # lin1.bias
        "w2": _uniform(ks[4], (1, HIDDEN[1]), b_h1),         # lin2.weight
        "b2": _uniform(ks[5], (1,), b_h1),                   # lin2.bias
        "s0w": _uniform(ks[6], (3, LATENT), b_lat),          # scale_net[0].weight
        "s0b": _uniform(ks[7], (3,), b_lat),                 # scale_net[0].bias
        "s1w": _uniform(ks[8], (3, 3), b_3),                 # scale_net[2].weight
        "s1b": _uniform(ks[9], (3,), b_3),                   # scale_net[2].bias
        "s2w": _uniform(ks[10], (1, 3), b_3),                # scale_net[4].weight
        "s2b": _uniform(ks[11], (1,), b_3),                  # scale_net[4].bias
    }


def pack_params(p):
    """Pack all weights/biases into one (64, 128) f32 slab (single DMA)."""
    slab = np.zeros((64, 128), np.float32)
    slab[:, 0:32] = np.asarray(p["w0"])
    slab[:, 32:96] = np.asarray(p["w1"])
    slab[:, 96] = np.asarray(p["b0"])
    slab[:, 97] = np.asarray(p["b1"])
    slab[:, 98] = np.asarray(p["w2"])[0]          # W2^T column
    slab[0, 99] = np.asarray(p["b2"])[0]
    slab[0:LATENT, 100:103] = np.asarray(p["s0w"]).T
    slab[0, 103:106] = np.asarray(p["s0b"])
    slab[0:3, 106:109] = np.asarray(p["s1w"])
    slab[0:3, 109] = np.asarray(p["s1b"])
    slab[0:3, 110] = np.asarray(p["s2w"])[0]      # S2^T column
    slab[0, 111] = np.asarray(p["s2b"])[0]
    return jnp.asarray(slab)


# ------------------------- pure-numpy (f64) reference ------------------------

def decoder_reference_np(inp_f64, p):
    g = lambda a: np.asarray(a, np.float64)
    x = np.maximum(inp_f64 @ g(p["w0"]).T + g(p["b0"]), 0.0)
    x = np.maximum(x @ g(p["w1"]).T + g(p["b1"]), 0.0)
    sdf = np.tanh(x @ g(p["w2"]).T + g(p["b2"]))           # (N, 1)
    z = inp_f64[0, :LATENT]                                # input[:, :-3][0]
    h = np.maximum(g(p["s0w"]) @ z + g(p["s0b"]), 0.0)
    h = np.maximum(g(p["s1w"]) @ h + g(p["s1b"]), 0.0)
    scale = g(p["s2w"]) @ h + g(p["s2b"])                  # (1,)
    return sdf, scale


# ----------------------------------- main ------------------------------------

if __name__ == "__main__":
    key = jax.random.PRNGKey(0)
    k_in, k_par = jax.random.split(key)
    inp = jax.random.normal(k_in, (N, DIN), jnp.float32)
    raw_params = make_params(k_par)
    packed = pack_params(raw_params)

    sdf, scale = decoder_forward(inp, packed)
    sdf, scale = jax.block_until_ready((sdf, scale))

    sdf_ref, scale_ref = decoder_reference_np(np.asarray(inp, np.float64),
                                              raw_params)
    assert sdf.shape == (N, 1) and scale.shape == (1,)
    np.testing.assert_allclose(np.asarray(sdf, np.float64), sdf_ref,
                               rtol=1e-4, atol=1e-4)
    np.testing.assert_allclose(np.asarray(scale, np.float64), scale_ref,
                               rtol=1e-4, atol=1e-4)
    print("KERNEL_OK")
</pallas_src>

<mosaic_0001>
module attributes {stable_mosaic.version = 11 : i64} {
  func.func @_decoder_kernel(%arg0: memref<32x128xf32, #tpu.memory_space<vmem>>, %arg1: memref<64x128xf32, #tpu.memory_space<vmem>>, %arg2: memref<1x128xf32, #tpu.memory_space<vmem>>, %arg3: memref<1x1xf32, #tpu.memory_space<vmem>>) attributes {dimension_semantics = [], scalar_prefetch = 0 : i64, scratch_operands = 0 : i64, tpu.core_type = #tpu.core_type<tc>} {
    %c0 = arith.constant 0 : index
    %c0_0 = arith.constant 0 : index
    %0 = vector.load %arg0[%c0, %c0_0] : memref<32x128xf32, #tpu.memory_space<vmem>>, vector<32x128xf32>
    %c0_1 = arith.constant 0 : index
    %c0_2 = arith.constant 0 : index
    %1 = vector.load %arg1[%c0_1, %c0_2] : memref<64x128xf32, #tpu.memory_space<vmem>>, vector<64x32xf32>
    %c0_3 = arith.constant 0 : index
    %c96 = arith.constant 96 : index
    %2 = vector.load %arg1[%c0_3, %c96] : memref<64x128xf32, #tpu.memory_space<vmem>>, vector<64x1xf32>
    %cst = arith.constant dense<0.000000e+00> : vector<64x128xf32>
    %3 = tpu.matmul %1, %0, %cst {dimension_numbers = #tpu.dot_dimension_numbers<[1], [0], [0], [1], [0, 0, 1, 1], [], []>} : vector<64x32xf32>, vector<32x128xf32>, vector<64x128xf32> -> vector<64x128xf32>
    %4 = vector.broadcast %2 : vector<64x1xf32> to vector<64x128xf32>
    %5 = arith.addf %3, %4 : vector<64x128xf32>
    %cst_4 = arith.constant 0.000000e+00 : f32
    %6 = vector.broadcast %cst_4 : f32 to vector<64x128xf32>
    %7 = arith.maximumf %5, %6 : vector<64x128xf32>
    %c0_5 = arith.constant 0 : index
    %c32 = arith.constant 32 : index
    %8 = vector.load %arg1[%c0_5, %c32] : memref<64x128xf32, #tpu.memory_space<vmem>>, vector<64x64xf32>
    %c0_6 = arith.constant 0 : index
    %c97 = arith.constant 97 : index
    %9 = vector.load %arg1[%c0_6, %c97] : memref<64x128xf32, #tpu.memory_space<vmem>>, vector<64x1xf32>
    %cst_7 = arith.constant dense<0.000000e+00> : vector<64x128xf32>
    %10 = tpu.matmul %8, %7, %cst_7 {dimension_numbers = #tpu.dot_dimension_numbers<[1], [0], [0], [1], [0, 0, 1, 1], [], []>} : vector<64x64xf32>, vector<64x128xf32>, vector<64x128xf32> -> vector<64x128xf32>
    %11 = vector.broadcast %9 : vector<64x1xf32> to vector<64x128xf32>
    %12 = arith.addf %10, %11 : vector<64x128xf32>
    %cst_8 = arith.constant 0.000000e+00 : f32
    %13 = vector.broadcast %cst_8 : f32 to vector<64x128xf32>
    %14 = arith.maximumf %12, %13 : vector<64x128xf32>
    %c0_9 = arith.constant 0 : index
    %c98 = arith.constant 98 : index
    %15 = vector.load %arg1[%c0_9, %c98] : memref<64x128xf32, #tpu.memory_space<vmem>>, vector<64x1xf32>
    %c0_10 = arith.constant 0 : index
    %c99 = arith.constant 99 : index
    %16 = vector.load %arg1[%c0_10, %c99] : memref<64x128xf32, #tpu.memory_space<vmem>>, vector<1x1xf32>
    %17 = vector.broadcast %15 : vector<64x1xf32> to vector<64x128xf32>
    %18 = arith.mulf %14, %17 : vector<64x128xf32>
    %cst_11 = arith.constant dense<0.000000e+00> : vector<128xf32>
    %19 = vector.multi_reduction <add>, %18, %cst_11 [0] : vector<64x128xf32> to vector<128xf32>
    %20 = vector.shape_cast %19 : vector<128xf32> to vector<1x128xf32>
    %21 = vector.broadcast %16 : vector<1x1xf32> to vector<1x128xf32>
    %22 = arith.addf %20, %21 : vector<1x128xf32>
    %23 = math.tanh %22 : vector<1x128xf32>
    %c0_12 = arith.constant 0 : index
    %c0_13 = arith.constant 0 : index
    %24 = vector.load %arg2[%c0_12, %c0_13] : memref<1x128xf32, #tpu.memory_space<vmem>>, vector<1x128xf32>
    tpu.vector_store %arg2[%c0_12, %c0_13], %23 {strides = array<i32>} : memref<1x128xf32, #tpu.memory_space<vmem>>, vector<1x128xf32>,
    %c0_14 = arith.constant 0 : index
    %c0_15 = arith.constant 0 : index
    %25 = vector.load %arg0[%c0_14, %c0_15] : memref<32x128xf32, #tpu.memory_space<vmem>>, vector<29x1xf32>
    %c0_16 = arith.constant 0 : index
    %c100 = arith.constant 100 : index
    %26 = vector.load %arg1[%c0_16, %c100] : memref<64x128xf32, #tpu.memory_space<vmem>>, vector<29x3xf32>
    %c0_17 = arith.constant 0 : index
    %c103 = arith.constant 103 : index
    %27 = vector.load %arg1[%c0_17, %c103] : memref<64x128xf32, #tpu.memory_space<vmem>>, vector<1x3xf32>
    %28 = vector.broadcast %25 : vector<29x1xf32> to vector<29x3xf32>
    %29 = arith.mulf %26, %28 : vector<29x3xf32>
    %cst_18 = arith.constant dense<0.000000e+00> : vector<3xf32>
    %30 = vector.multi_reduction <add>, %29, %cst_18 [0] : vector<29x3xf32> to vector<3xf32>
    %31 = vector.shape_cast %30 : vector<3xf32> to vector<1x3xf32>
    %32 = arith.addf %31, %27 : vector<1x3xf32>
    %cst_19 = arith.constant 0.000000e+00 : f32
    %33 = vector.broadcast %cst_19 : f32 to vector<1x3xf32>
    %34 = arith.maximumf %32, %33 : vector<1x3xf32>
    %c0_20 = arith.constant 0 : index
    %c106 = arith.constant 106 : index
    %35 = vector.load %arg1[%c0_20, %c106] : memref<64x128xf32, #tpu.memory_space<vmem>>, vector<3x3xf32>
    %c0_21 = arith.constant 0 : index
    %c109 = arith.constant 109 : index
    %36 = vector.load %arg1[%c0_21, %c109] : memref<64x128xf32, #tpu.memory_space<vmem>>, vector<3x1xf32>
    %37 = vector.broadcast %34 : vector<1x3xf32> to vector<3x3xf32>
    %38 = arith.mulf %35, %37 : vector<3x3xf32>
    %cst_22 = arith.constant dense<0.000000e+00> : vector<3xf32>
    %39 = vector.multi_reduction <add>, %38, %cst_22 [1] : vector<3x3xf32> to vector<3xf32>
    %40 = vector.shape_cast %39 : vector<3xf32> to vector<3x1xf32>
    %41 = arith.addf %40, %36 : vector<3x1xf32>
    %cst_23 = arith.constant 0.000000e+00 : f32
    %42 = vector.broadcast %cst_23 : f32 to vector<3x1xf32>
    %43 = arith.maximumf %41, %42 : vector<3x1xf32>
    %c0_24 = arith.constant 0 : index
    %c110 = arith.constant 110 : index
    %44 = vector.load %arg1[%c0_24, %c110] : memref<64x128xf32, #tpu.memory_space<vmem>>, vector<3x1xf32>
    %c0_25 = arith.constant 0 : index
    %c111 = arith.constant 111 : index
    %45 = vector.load %arg1[%c0_25, %c111] : memref<64x128xf32, #tpu.memory_space<vmem>>, vector<1x1xf32>
    %46 = arith.mulf %44, %43 : vector<3x1xf32>
    %cst_26 = arith.constant dense<0.000000e+00> : vector<1xf32>
    %47 = vector.multi_reduction <add>, %46, %cst_26 [0] : vector<3x1xf32> to vector<1xf32>
    %48 = vector.shape_cast %47 : vector<1xf32> to vector<1x1xf32>
    %49 = arith.addf %48, %45 : vector<1x1xf32>
    %c0_27 = arith.constant 0 : index
    %c0_28 = arith.constant 0 : index
    %50 = vector.load %arg3[%c0_27, %c0_28] : memref<1x1xf32, #tpu.memory_space<vmem>>, vector<1x1xf32>
    tpu.vector_store %arg3[%c0_27, %c0_28], %49 {strides = array<i32>} : memref<1x1xf32, #tpu.memory_space<vmem>>, vector<1x1xf32>,
    return
  }
}

</mosaic_0001>

<llo_original>
// kernel: decoder_forward.1
$region0: #{decoder_forward.1}
  #allocation0 [shape = 'u32[]', space=smem, size = 0x4, offset = 0x4, fixed_abs, tag = 'smem constant byte address 0x4 - core index']
  #allocation1 [shape = 'u32[144,128]{1,0:T(1,128)}', space=vmem, size = 0x12000, scoped, tag = 'internal scratch']
  %s0 = inlined_call_operand.hbm [shape: f32[32,128], index: 0, kind: input, shape index: {}]
  %s1 = inlined_call_operand.hbm [shape: f32[64,128], index: 1, kind: input, shape index: {}]
  %s2 = inlined_call_operand.hbm [shape: f32[1,128], index: 2, kind: output, shape index: {0}]
  %s3 = inlined_call_operand.hbm [shape: f32[1,1], index: 3, kind: output, shape index: {1}]
  %4 = xla_tuple %s2, %s3
  %s5 = sld [smem:[#allocation0]]
  $region34: #{decoder_forward.1} parent=0
    _
  %s7 = ssub.s32 1, %s5
  %s8 = scalar_select 0, %s7, %s5
  $region1: #{decoder_forward.1} parent=0
    #allocation2 [shape = 'u8[16384]{0}', space=vmem, size = 0x4000, scoped, tag = 'input window, operand 0, single buffered']
    #allocation3 [shape = 's32[1]{0}', space=sflag, size = 0x4, scoped, tag = 'scoped memory for decoder_forward.1']
    #allocation4 [shape = 's32[1]{0}', space=sflag, size = 0x4, scoped, tag = 'scoped memory for decoder_forward.1']
    #allocation5 [shape = 'u8[32768]{0}', space=vmem, size = 0x8000, scoped, tag = 'input window, operand 1, single buffered']
    #allocation6 [shape = 's32[1]{0}', space=sflag, size = 0x4, scoped, tag = 'scoped memory for decoder_forward.1']
    #allocation7 [shape = 'u8[512]{0}', space=vmem, size = 0x400, scoped, tag = 'output window, operand 0, single buffered']
    #allocation8 [shape = 'u8[512]{0}', space=vmem, size = 0x400, scoped, tag = 'output window, operand 1, single buffered']
    #allocation9 [shape = 's32[1]{0}', space=sflag, size = 0x4, scoped, tag = 'scoped memory for decoder_forward.1']
    %9 = vsyncpa [#allocation3], 0
    %10 = vsyncpa [#allocation6], 0
    %11 = vsyncpa [#allocation4], 0
    %12 = vsyncpa [#allocation9], 0
    // Predicated region
    $region2: #{decoder_forward.1} parent=1 // pred_check
      _
    $region3: #{decoder_forward.1} parent=1 // pred_check_branch
      %14 = sbr.rel (0) target = $region5
    $region4: #{decoder_forward.1} parent=1 // pred_region
      %s16 = ssub.s32 512, 512
      %17 = vsyncadd [#allocation3], %s16
      %s18 = sshll.u32 [#allocation2], 4
      %s19 = int_to_ptr.vmem [resolvable:$true] %s18
      %24 = dma.hbm_to_vmem [thread:$0]  %s0, 512, %s19, [#allocation3], 128, 128, 8
    $region5: #{decoder_forward.1} parent=1 // pred_fallthru
      _
    // Predicated region
    $region6: #{decoder_forward.1} parent=1 // pred_check
      _
    $region7: #{decoder_forward.1} parent=1 // pred_check_branch
      %26 = sbr.rel (0) target = $region9
    $region8: #{decoder_forward.1} parent=1 // pred_region
      %s28 = ssub.s32 1024, 1024
      %29 = vsyncadd [#allocation6], %s28
      %s30 = sshll.u32 [#allocation5], 4
      %s31 = int_to_ptr.vmem [resolvable:$true] %s30
      %36 = dma.hbm_to_vmem [thread:$0]  %s1, 1024, %s31, [#allocation6], 128, 128, 8
    $region9: #{decoder_forward.1} parent=1 // pred_fallthru
      _
    // Predicated region
    $region10: #{decoder_forward.1} parent=1 // pred_check
      _
    $region11: #{decoder_forward.1} parent=1 // pred_check_branch
      %38 = sbr.rel (0) target = $region13
    $region12: #{decoder_forward.1} parent=1 // pred_region
      %39 = dma.done [#allocation3], 512
    $region13: #{decoder_forward.1} parent=1 // pred_fallthru
      _
    // Predicated region
    $region14: #{decoder_forward.1} parent=1 // pred_check
      _
    $region15: #{decoder_forward.1} parent=1 // pred_check_branch
      %41 = sbr.rel (0) target = $region17
    $region16: #{decoder_forward.1} parent=1 // pred_region
      %42 = dma.done [#allocation6], 1024
    $region17: #{decoder_forward.1} parent=1 // pred_fallthru
      _
    %v43 = vld [vmem:[#allocation2] sm:$0xff]
    %v44 = vld [vmem:[#allocation2 + $0x8] sm:$0xff]
    %v45 = vld [vmem:[#allocation2 + $0x10] sm:$0xff]
    %v46 = vld [vmem:[#allocation2 + $0x18] sm:$0xff]
    %v47 = vld [vmem:[#allocation5] sm:$0xff]
    %v48 = vld [vmem:[#allocation5 + $0x8] sm:$0xff]
    %v49 = vld [vmem:[#allocation5 + $0x10] sm:$0xff]
    %v50 = vld [vmem:[#allocation5 + $0x18] sm:$0xff]
    %v51 = vld [vmem:[#allocation5 + $0x20] sm:$0xff]
    %v52 = vld [vmem:[#allocation5 + $0x28] sm:$0xff]
    %v53 = vld [vmem:[#allocation5 + $0x30] sm:$0xff]
    %v54 = vld [vmem:[#allocation5 + $0x38] sm:$0xff]
    %56 = vset.pattern.permute.xlu0 96
    %57 = vperm.xlu0 %56, %v47
    %v58 = vpop.permute.xlu0 %57
    %61 = vset.pattern.permute.xlu0 96
    %62 = vperm.xlu0 %61, %v48
    %v63 = vpop.permute.xlu0 %62
    %66 = vset.pattern.permute.xlu0 96
    %67 = vperm.xlu0 %66, %v49
    %v68 = vpop.permute.xlu0 %67
    %71 = vset.pattern.permute.xlu0 96
    %72 = vperm.xlu0 %71, %v50
    %v73 = vpop.permute.xlu0 %72
    %76 = vset.pattern.permute.xlu0 96
    %77 = vperm.xlu0 %76, %v51
    %v78 = vpop.permute.xlu0 %77
    %81 = vset.pattern.permute.xlu0 96
    %82 = vperm.xlu0 %81, %v52
    %v83 = vpop.permute.xlu0 %82
    %86 = vset.pattern.permute.xlu0 96
    %87 = vperm.xlu0 %86, %v53
    %v88 = vpop.permute.xlu0 %87
    %91 = vset.pattern.permute.xlu0 96
    %92 = vperm.xlu0 %91, %v54
    %v93 = vpop.permute.xlu0 %92
    %vm95 = vcmask 261120
    %v96 = vsel %vm95, %v47, 0
    %v98 = vsel %vm95, %v48, 0
    %v100 = vsel %vm95, %v49, 0
    %v102 = vsel %vm95, %v50, 0
    %v104 = vsel %vm95, %v51, 0
    %v106 = vsel %vm95, %v52, 0
    %v108 = vsel %vm95, %v53, 0
    %v110 = vsel %vm95, %v54, 0
    %112 = vmatprep.subr.mxu0 0.0
    %113 = vmatpush1.msra.mxu0 %v43
    %114 = vmatprep.subr.mxu0 0.0
    %115 = vmatpush1.msra.mxu0 %v44
    %116 = vmatprep.subr.mxu0 0.0
    %117 = vmatpush1.msra.mxu0 %v45
    %118 = vmatprep.subr.mxu0 0.0
    %119 = vmatpush1.msra.mxu0 %v46
    %120 = vmatprep.subr.mxu0 0.0
    %121 = vmatpush1.msra.mxu0 0.0
    %122 = vmatprep.subr.mxu0 0.0
    %123 = vmatpush1.msra.mxu0 0.0
    %124 = vmatprep.subr.mxu0 0.0
    %125 = vmatpush1.msra.mxu0 0.0
    %126 = vmatprep.subr.mxu0 0.0
    %127 = vmatpush1.msra.mxu0 0.0
    %128 = vmatprep.subr.mxu0 0.0
    %129 = vmatpush1.msra.mxu0 0.0
    %130 = vmatprep.subr.mxu0 0.0
    %131 = vmatpush1.msra.mxu0 0.0
    %132 = vmatprep.subr.mxu0 0.0
    %133 = vmatpush1.msra.mxu0 0.0
    %134 = vmatprep.subr.mxu0 0.0
    %135 = vmatpush1.msra.mxu0 0.0
    %136 = vmatprep.subr.mxu0 0.0
    %137 = vmatpush1.msra.mxu0 0.0
    %138 = vmatprep.subr.mxu0 0.0
    %139 = vmatpush1.msra.mxu0 0.0
    %140 = vmatprep.subr.mxu0 0.0
    %141 = vmatpush1.msra.mxu0 0.0
    %142 = vmatprep.subr.mxu0 0.0
    %143 = vmatpush1.msra.mxu0 0.0
    %144 = vmatprep.subr.mxu0 0.0
    %145 = vmatpush1.msra.mxu0 0.0
    %146 = vmatprep.subr.mxu0 0.0
    %147 = vmatpush1.msra.mxu0 0.0
    %148 = vmatprep.subr.mxu0 0.0
    %149 = vmatpush1.msra.mxu0 0.0
    %150 = vmatprep.subr.mxu0 0.0
    %151 = vmatpush1.msra.mxu0 0.0
    %152 = vmatprep.subr.mxu0 0.0
    %153 = vmatpush1.msra.mxu0 0.0
    %154 = vmatprep.subr.mxu0 0.0
    %155 = vmatpush1.msra.mxu0 0.0
    %156 = vmatprep.subr.mxu0 0.0
    %157 = vmatpush1.msra.mxu0 0.0
    %158 = vmatprep.subr.mxu0 0.0
    %159 = vmatpush1.msra.mxu0 0.0
    %160 = vmatprep.subr.mxu0 0.0
    %161 = vmatpush1.msra.mxu0 0.0
    %162 = vmatprep.subr.mxu0 0.0
    %163 = vmatpush1.msra.mxu0 0.0
    %164 = vmatprep.subr.mxu0 0.0
    %165 = vmatpush1.msra.mxu0 0.0
    %166 = vmatprep.subr.mxu0 0.0
    %167 = vmatpush1.msra.mxu0 0.0
    %168 = vmatprep.subr.mxu0 0.0
    %169 = vmatpush1.msra.mxu0 0.0
    %170 = vmatprep.subr.mxu0 0.0
    %171 = vmatpush1.msra.mxu0 0.0
    %172 = vmatprep.subr.mxu0 0.0
    %173 = vmatpush1.msra.mxu0 0.0
    %174 = vmatprep.subr.mxu0 0.0
    %175 = vmatpush1.msra.mxu0 0.0
    %176 = vmatprep.mubr.f32.mxu0 0.0
    %177 = vmatmul.mubr.f32.gmra.mrb[0].mxu0 %v96
    %v178 = vpop.f32.mrb[0].mxu0
    %v179 = vadd.f32 %v58, %v178
    %v180 = vpop.f32.mrb[0].mxu0
    %181 = vmatprep.mubr.f32.mxu0 0.0
    %182 = vmatmul.mubr.f32.gmra.mrb[0].mxu0 %v98
    %v183 = vpop.f32.mrb[0].mxu0
    %v184 = vadd.f32 %v63, %v183
    %v185 = vpop.f32.mrb[0].mxu0
    %186 = vmatprep.mubr.f32.mxu0 0.0
    %187 = vmatmul.mubr.f32.gmra.mrb[0].mxu0 %v100
    %v188 = vpop.f32.mrb[0].mxu0
    %v189 = vadd.f32 %v68, %v188
    %v190 = vpop.f32.mrb[0].mxu0
    %191 = vmatprep.mubr.f32.mxu0 0.0
    %192 = vmatmul.mubr.f32.gmra.mrb[0].mxu0 %v102
    %v193 = vpop.f32.mrb[0].mxu0
    %v194 = vadd.f32 %v73, %v193
    %v195 = vpop.f32.mrb[0].mxu0
    %196 = vmatprep.mubr.f32.mxu0 0.0
    %197 = vmatmul.mubr.f32.gmra.mrb[0].mxu0 %v104
    %v198 = vpop.f32.mrb[0].mxu0
    %v199 = vadd.f32 %v78, %v198
    %v200 = vpop.f32.mrb[0].mxu0
    %201 = vmatprep.mubr.f32.mxu0 0.0
    %202 = vmatmul.mubr.f32.gmra.mrb[0].mxu0 %v106
    %v203 = vpop.f32.mrb[0].mxu0
    %v204 = vadd.f32 %v83, %v203
    %v205 = vpop.f32.mrb[0].mxu0
    %206 = vmatprep.mubr.f32.mxu0 0.0
    %207 = vmatmul.mubr.f32.gmra.mrb[0].mxu0 %v108
    %v208 = vpop.f32.mrb[0].mxu0
    %v209 = vadd.f32 %v88, %v208
    %v210 = vpop.f32.mrb[0].mxu0
    %211 = vmatprep.mubr.f32.mxu0 0.0
    %212 = vmatmul.mubr.f32.gmra.mrb[0].mxu0 %v110
    %v213 = vpop.f32.mrb[0].mxu0
    %v214 = vadd.f32 %v93, %v213
    %v215 = vpop.f32.mrb[0].mxu0
    %216 = vdwg.mxu0
    %v217 = vmax.f32 %v179, 0.0
    %v218 = vmax.f32 %v184, 0.0
    %v219 = vmax.f32 %v189, 0.0
    %v220 = vmax.f32 %v194, 0.0
    %v221 = vmax.f32 %v199, 0.0
    %v222 = vmax.f32 %v204, 0.0
    %v223 = vmax.f32 %v209, 0.0
    %v224 = vmax.f32 %v214, 0.0
    %225 = vset.pattern.permute.xlu0 97
    %226 = vperm.xlu0 %225, %v47
    %v227 = vpop.permute.xlu0 %226
    %229 = vset.pattern.permute.xlu0 97
    %230 = vperm.xlu0 %229, %v48
    %v231 = vpop.permute.xlu0 %230
    %233 = vset.pattern.permute.xlu0 97
    %234 = vperm.xlu0 %233, %v49
    %v235 = vpop.permute.xlu0 %234
    %237 = vset.pattern.permute.xlu0 97
    %238 = vperm.xlu0 %237, %v50
    %v239 = vpop.permute.xlu0 %238
    %241 = vset.pattern.permute.xlu0 97
    %242 = vperm.xlu0 %241, %v51
    %v243 = vpop.permute.xlu0 %242
    %245 = vset.pattern.permute.xlu0 97
    %246 = vperm.xlu0 %245, %v52
    %v247 = vpop.permute.xlu0 %246
    %249 = vset.pattern.permute.xlu0 97
    %250 = vperm.xlu0 %249, %v53
    %v251 = vpop.permute.xlu0 %250
    %253 = vset.pattern.permute.xlu0 97
    %254 = vperm.xlu0 %253, %v54
    %v255 = vpop.permute.xlu0 %254
    %257 = vrot.lane.b32.xlu0 %v47, 96
    %v258 = vpop.permute.xlu0 %257
    %259 = vrot.lane.b32.xlu0 %v48, 96
    %v260 = vpop.permute.xlu0 %259
    %261 = vrot.lane.b32.xlu0 %v49, 96
    %v262 = vpop.permute.xlu0 %261
    %263 = vrot.lane.b32.xlu0 %v50, 96
    %v264 = vpop.permute.xlu0 %263
    %265 = vrot.lane.b32.xlu0 %v51, 96
    %v266 = vpop.permute.xlu0 %265
    %267 = vrot.lane.b32.xlu0 %v52, 96
    %v268 = vpop.permute.xlu0 %267
    %269 = vrot.lane.b32.xlu0 %v53, 96
    %v270 = vpop.permute.xlu0 %269
    %271 = vrot.lane.b32.xlu0 %v54, 96
    %v272 = vpop.permute.xlu0 %271
    %vm273 = vcmask 523264
    %v274 = vsel %vm273, %v258, 0
    %v276 = vsel %vm273, %v260, 0
    %v278 = vsel %vm273, %v262, 0
    %v280 = vsel %vm273, %v264, 0
    %v282 = vsel %vm273, %v266, 0
    %v284 = vsel %vm273, %v268, 0
    %v286 = vsel %vm273, %v270, 0
    %v288 = vsel %vm273, %v272, 0
    %290 = vmatprep.subr.mxu0 0.0
    %291 = vmatpush1.msra.mxu0 %v217
    %292 = vmatprep.subr.mxu0 0.0
    %293 = vmatpush1.msra.mxu0 %v218
    %294 = vmatprep.subr.mxu0 0.0
    %295 = vmatpush1.msra.mxu0 %v219
    %296 = vmatprep.subr.mxu0 0.0
    %297 = vmatpush1.msra.mxu0 %v220
    %298 = vmatprep.subr.mxu0 0.0
    %299 = vmatpush1.msra.mxu0 %v221
    %300 = vmatprep.subr.mxu0 0.0
    %301 = vmatpush1.msra.mxu0 %v222
    %302 = vmatprep.subr.mxu0 0.0
    %303 = vmatpush1.msra.mxu0 %v223
    %304 = vmatprep.subr.mxu0 0.0
    %305 = vmatpush1.msra.mxu0 %v224
    %306 = vmatprep.subr.mxu0 0.0
    %307 = vmatpush1.msra.mxu0 0.0
    %308 = vmatprep.subr.mxu0 0.0
    %309 = vmatpush1.msra.mxu0 0.0
    %310 = vmatprep.subr.mxu0 0.0
    %311 = vmatpush1.msra.mxu0 0.0
    %312 = vmatprep.subr.mxu0 0.0
    %313 = vmatpush1.msra.mxu0 0.0
    %314 = vmatprep.subr.mxu0 0.0
    %315 = vmatpush1.msra.mxu0 0.0
    %316 = vmatprep.subr.mxu0 0.0
    %317 = vmatpush1.msra.mxu0 0.0
    %318 = vmatprep.subr.mxu0 0.0
    %319 = vmatpush1.msra.mxu0 0.0
    %320 = vmatprep.subr.mxu0 0.0
    %321 = vmatpush1.msra.mxu0 0.0
    %322 = vmatprep.subr.mxu0 0.0
    %323 = vmatpush1.msra.mxu0 0.0
    %324 = vmatprep.subr.mxu0 0.0
    %325 = vmatpush1.msra.mxu0 0.0
    %326 = vmatprep.subr.mxu0 0.0
    %327 = vmatpush1.msra.mxu0 0.0
    %328 = vmatprep.subr.mxu0 0.0
    %329 = vmatpush1.msra.mxu0 0.0
    %330 = vmatprep.subr.mxu0 0.0
    %331 = vmatpush1.msra.mxu0 0.0
    %332 = vmatprep.subr.mxu0 0.0
    %333 = vmatpush1.msra.mxu0 0.0
    %334 = vmatprep.subr.mxu0 0.0
    %335 = vmatpush1.msra.mxu0 0.0
    %336 = vmatprep.subr.mxu0 0.0
    %337 = vmatpush1.msra.mxu0 0.0
    %338 = vmatprep.subr.mxu0 0.0
    %339 = vmatpush1.msra.mxu0 0.0
    %340 = vmatprep.subr.mxu0 0.0
    %341 = vmatpush1.msra.mxu0 0.0
    %342 = vmatprep.subr.mxu0 0.0
    %343 = vmatpush1.msra.mxu0 0.0
    %344 = vmatprep.subr.mxu0 0.0
    %345 = vmatpush1.msra.mxu0 0.0
    %346 = vmatprep.subr.mxu0 0.0
    %347 = vmatpush1.msra.mxu0 0.0
    %348 = vmatprep.subr.mxu0 0.0
    %349 = vmatpush1.msra.mxu0 0.0
    %350 = vmatprep.subr.mxu0 0.0
    %351 = vmatpush1.msra.mxu0 0.0
    %352 = vmatprep.subr.mxu0 0.0
    %353 = vmatpush1.msra.mxu0 0.0
    %354 = vmatprep.mubr.f32.mxu0 0.0
    %355 = vmatmul.mubr.f32.gmra.mrb[0].mxu0 %v274
    %v356 = vpop.f32.mrb[0].mxu0
    %v357 = vadd.f32 %v227, %v356
    %v358 = vpop.f32.mrb[0].mxu0
    %359 = vmatprep.mubr.f32.mxu0 0.0
    %360 = vmatmul.mubr.f32.gmra.mrb[0].mxu0 %v276
    %v361 = vpop.f32.mrb[0].mxu0
    %v362 = vadd.f32 %v231, %v361
    %v363 = vpop.f32.mrb[0].mxu0
    %364 = vmatprep.mubr.f32.mxu0 0.0
    %365 = vmatmul.mubr.f32.gmra.mrb[0].mxu0 %v278
    %v366 = vpop.f32.mrb[0].mxu0
    %v367 = vadd.f32 %v235, %v366
    %v368 = vpop.f32.mrb[0].mxu0
    %369 = vmatprep.mubr.f32.mxu0 0.0
    %370 = vmatmul.mubr.f32.gmra.mrb[0].mxu0 %v280
    %v371 = vpop.f32.mrb[0].mxu0
    %v372 = vadd.f32 %v239, %v371
    %v373 = vpop.f32.mrb[0].mxu0
    %374 = vmatprep.mubr.f32.mxu0 0.0
    %375 = vmatmul.mubr.f32.gmra.mrb[0].mxu0 %v282
    %v376 = vpop.f32.mrb[0].mxu0
    %v377 = vadd.f32 %v243, %v376
    %v378 = vpop.f32.mrb[0].mxu0
    %379 = vmatprep.mubr.f32.mxu0 0.0
    %380 = vmatmul.mubr.f32.gmra.mrb[0].mxu0 %v284
    %v381 = vpop.f32.mrb[0].mxu0
    %v382 = vadd.f32 %v247, %v381
    %v383 = vpop.f32.mrb[0].mxu0
    %384 = vmatprep.mubr.f32.mxu0 0.0
    %385 = vmatmul.mubr.f32.gmra.mrb[0].mxu0 %v286
    %v386 = vpop.f32.mrb[0].mxu0
    %v387 = vadd.f32 %v251, %v386
    %v388 = vpop.f32.mrb[0].mxu0
    %389 = vmatprep.mubr.f32.mxu0 0.0
    %390 = vmatmul.mubr.f32.gmra.mrb[0].mxu0 %v288
    %v391 = vpop.f32.mrb[0].mxu0
    %v392 = vadd.f32 %v255, %v391
    %v393 = vpop.f32.mrb[0].mxu0
    %394 = vdwg.mxu0
    %v395 = vmax.f32 %v357, 0.0
    %v396 = vmax.f32 %v362, 0.0
    %v397 = vmax.f32 %v367, 0.0
    %v398 = vmax.f32 %v372, 0.0
    %v399 = vmax.f32 %v377, 0.0
    %v400 = vmax.f32 %v382, 0.0
    %v401 = vmax.f32 %v387, 0.0
    %v402 = vmax.f32 %v392, 0.0
    %v403 = vld [vmem:[#allocation5] sm:$0x1]
    %404 = vset.pattern.permute.xlu0 98
    %405 = vperm.xlu0 %404, %v47
    %v406 = vpop.permute.xlu0 %405
    %408 = vset.pattern.permute.xlu0 98
    %409 = vperm.xlu0 %408, %v48
    %v410 = vpop.permute.xlu0 %409
    %412 = vset.pattern.permute.xlu0 98
    %413 = vperm.xlu0 %412, %v49
    %v414 = vpop.permute.xlu0 %413
    %416 = vset.pattern.permute.xlu0 98
    %417 = vperm.xlu0 %416, %v50
    %v418 = vpop.permute.xlu0 %417
    %420 = vset.pattern.permute.xlu0 98
    %421 = vperm.xlu0 %420, %v51
    %v422 = vpop.permute.xlu0 %421
    %424 = vset.pattern.permute.xlu0 98
    %425 = vperm.xlu0 %424, %v52
    %v426 = vpop.permute.xlu0 %425
    %428 = vset.pattern.permute.xlu0 98
    %429 = vperm.xlu0 %428, %v53
    %v430 = vpop.permute.xlu0 %429
    %432 = vset.pattern.permute.xlu0 98
    %433 = vperm.xlu0 %432, %v54
    %v434 = vpop.permute.xlu0 %433
    %v436 = vmul.f32 %v395, %v406
    %v437 = vmul.f32 %v396, %v410
    %v438 = vmul.f32 %v397, %v414
    %v439 = vmul.f32 %v398, %v418
    %v440 = vmul.f32 %v399, %v422
    %v441 = vmul.f32 %v400, %v426
    %v442 = vmul.f32 %v401, %v430
    %v443 = vmul.f32 %v402, %v434
    %v444 = vadd.f32 %v436, %v437
    %v445 = vadd.f32 %v444, %v438
    %v446 = vadd.f32 %v445, %v439
    %v447 = vadd.f32 %v446, %v440
    %v448 = vadd.f32 %v447, %v441
    %v449 = vadd.f32 %v448, %v442
    %v450 = vadd.f32 %v449, %v443
    %v451 = vrot.slane %v450, 4
    %v452 = vadd.f32 %v450, %v451
    %v453 = vrot.slane %v452, 2
    %v454 = vadd.f32 %v452, %v453
    %v455 = vrot.slane %v454, 1
    %v456 = vadd.f32 %v454, %v455
    %458 = vset.pattern.permute.xlu0 99
    %459 = vperm.xlu0 %458, %v403
    %v460 = vpop.permute.xlu0 %459
    %v462 = vadd.f32 %v456, %v460
    %v463 = vtanh.pop %v462
    %464 = vst [vmem:[#allocation7] sm:$0x1] %v463
    %v465 = vld [vmem:[#allocation2] sm:$0xff]
    %v466 = vld [vmem:[#allocation2 + $0x8] sm:$0xff]
    %v467 = vld [vmem:[#allocation2 + $0x10] sm:$0xff]
    %v468 = vld [vmem:[#allocation2 + $0x18] sm:$0x1f]
    %v469 = vld [vmem:[#allocation5] sm:$0xff]
    %v470 = vld [vmem:[#allocation5 + $0x8] sm:$0xff]
    %v471 = vld [vmem:[#allocation5 + $0x10] sm:$0xff]
    %v472 = vld [vmem:[#allocation5 + $0x18] sm:$0x1f]
    %v473 = vld [vmem:[#allocation5] sm:$0x1]
    %475 = vset.pattern.permute.xlu0 0
    %476 = vperm.xlu0 %475, %v465
    %v477 = vpop.permute.xlu0 %476
    %480 = vset.pattern.permute.xlu0 0
    %481 = vperm.xlu0 %480, %v466
    %v482 = vpop.permute.xlu0 %481
    %485 = vset.pattern.permute.xlu0 0
    %486 = vperm.xlu0 %485, %v467
    %v487 = vpop.permute.xlu0 %486
    %490 = vset.pattern.permute.xlu0 0
    %491 = vperm.xlu0 %490, %v468
    %v492 = vpop.permute.xlu0 %491
    %v494 = vmul.f32 %v469, %v477
    %v495 = vmul.f32 %v470, %v482
    %v496 = vmul.f32 %v471, %v487
    %v497 = vmul.f32 %v472, %v492
    %vm498 = vcmask 843552
    %v499 = vsel %vm498, %v494, 0.0
    %v500 = vsel %vm498, %v495, 0.0
    %v501 = vadd.f32 %v499, %v500
    %v502 = vsel %vm498, %v496, 0.0
    %v503 = vadd.f32 %v501, %v502
    %vm504 = vcmask 840480
    %v505 = vsel %vm504, %v497, 0.0
    %v506 = vadd.f32 %v503, %v505
    %v507 = vrot.slane %v506, 4
    %v508 = vadd.f32 %v506, %v507
    %v509 = vrot.slane %v508, 2
    %v510 = vadd.f32 %v508, %v509
    %v511 = vrot.slane %v510, 1
    %v512 = vadd.f32 %v510, %v511
    %514 = vrot.lane.b32.xlu0 %v473, 125
    %v515 = vpop.permute.xlu0 %514
    %v517 = vadd.f32 %v512, %v515
    %v518 = vmax.f32 %v517, 0.0
    %v519 = vld [vmem:[#allocation5] sm:$0x7]
    %v520 = vlaneseq
    %v521 = vshrl.u32 %v520, 7
    %v522 = vsub.s32 0, %v521
    %v523 = vrot.slane %v518, %v522
    %525 = vrot.lane.b32.xlu0 %v523, 6
    %v526 = vpop.permute.xlu0 %525
    %v528 = vmul.f32 %v519, %v526
    %530 = vrot.lane.b32.xlu0 %v528, 22
    %v531 = vpop.permute.xlu0 %530
    %vm533 = vcmask 18432
    %v534 = vsel %vm533, %v531, 0.0
    %535 = vadd.xlane.f32.xlu0 %v534
    %v536 = vpop.xlane.xlu0 %535
    %v537 = vadd.f32 %v536, %v519
    %v538 = vmax.f32 %v537, 0.0
    %540 = vrot.lane.b32.xlu0 %v538, 1
    %v541 = vpop.permute.xlu0 %540
    %v543 = vmul.f32 %v519, %v541
    %vm544 = vcmask 904048
    %v545 = vsel %vm544, %v543, 0.0
    %v546 = vrot.slane %v545, 4
    %v547 = vadd.f32 %v545, %v546
    %v548 = vrot.slane %v547, 2
    %v549 = vadd.f32 %v547, %v548
    %v550 = vrot.slane %v549, 1
    %v551 = vadd.f32 %v549, %v550
    %552 = vrot.lane.b32.xlu0 %v473, 127
    %v553 = vpop.permute.xlu0 %552
    %v555 = vadd.f32 %v551, %v553
    %557 = vrot.lane.b32.xlu0 %v555, 18
    %v558 = vpop.permute.xlu0 %557
    %vm560 = vcmask 0
    %561 = vst.msk [vmem:[#allocation8] sm:$0x1] %vm560, %v558
    // Predicated region
    $region18: #{decoder_forward.1} parent=1 // pred_check
      _
    $region19: #{decoder_forward.1} parent=1 // pred_check_branch
      %563 = sbr.rel (0) target = $region21
    $region20: #{decoder_forward.1} parent=1 // pred_region
      %s565 = ssub.s32 16, 16
      %566 = vsyncadd [#allocation4], %s565
      %s568 = sshll.u32 [#allocation7], 4
      %s569 = int_to_ptr.vmem [resolvable:$true] %s568
      %571 = dma.vmem_to_hbm [thread:$0]  %s569, 16, %s2, [#allocation4]
    $region21: #{decoder_forward.1} parent=1 // pred_fallthru
      _
    // Predicated region
    $region22: #{decoder_forward.1} parent=1 // pred_check
      _
    $region23: #{decoder_forward.1} parent=1 // pred_check_branch
      %573 = sbr.rel (0) target = $region25
    $region24: #{decoder_forward.1} parent=1 // pred_region
      %s575 = ssub.s32 16, 16
      %576 = vsyncadd [#allocation9], %s575
      %s578 = sshll.u32 [#allocation8], 4
      %s579 = int_to_ptr.vmem [resolvable:$true] %s578
      %581 = dma.vmem_to_hbm [thread:$0]  %s579, 16, %s3, [#allocation9]
    $region25: #{decoder_forward.1} parent=1 // pred_fallthru
      _
    // Predicated region
    $region26: #{decoder_forward.1} parent=1 // pred_check
      _
    $region27: #{decoder_forward.1} parent=1 // pred_check_branch
      %583 = sbr.rel (0) target = $region29
    $region28: #{decoder_forward.1} parent=1 // pred_region
      %584 = dma.done [#allocation4], 16
    $region29: #{decoder_forward.1} parent=1 // pred_fallthru
      _
    // Predicated region
    $region30: #{decoder_forward.1} parent=1 // pred_check
      _
    $region31: #{decoder_forward.1} parent=1 // pred_check_branch
      %586 = sbr.rel (0) target = $region33
    $region32: #{decoder_forward.1} parent=1 // pred_region
      %587 = dma.done [#allocation9], 16
    $region33: #{decoder_forward.1} parent=1 // pred_fallthru
      _
    %588 = vsyncpa [#allocation3], 1
    %589 = vsyncpa [#allocation6], 1
    %590 = vsyncpa [#allocation4], 1
    %591 = vsyncpa [#allocation9], 1

</llo_original>
